<compile_context>
chip_gen: v7x
topology: tpu7x:2x2x1
jax: 0.10.0
libtpu: 0.0.40
codegen_flags: <defaults>
</compile_context>

<pallas_src>
import functools

import jax
import jax.numpy as jnp
from jax.experimental import pallas as pl
from jax.experimental.pallas import tpu as pltpu

_EPS = 1e-6
_MAX_UNROLLED_CH = 64          # flat/unrolled kernel only for small C


# --------------------------------------------------------------------------- #
# VMEM budgets / tile picking
# --------------------------------------------------------------------------- #
def _round_up(v, m):
    return -(-v // m) * m


def _vmem_capacity_bytes():
    try:
        info = pltpu.get_tpu_info()
        for attr in ("vmem_capacity_bytes", "vmem_bytes"):
            v = getattr(info, attr, None)
            if v:
                return int(v)
    except Exception:
        pass
    try:
        kind = jax.devices()[0].device_kind.lower()
        if ("v5" in kind) or ("v6" in kind):
            return 128 * 1024 * 1024
    except Exception:
        pass
    return 64 * 1024 * 1024    # conservative (v7x per-TC)


def _budgets():
    """(x tile budget bytes, scoped vmem_limit_bytes) per TPU generation."""
    cap = _vmem_capacity_bytes()
    if cap >= 96 * 1024 * 1024:            # v5e / v6e: 128 MiB physical VMEM
        return 8 * 1024 * 1024, 64 * 1024 * 1024
    return 4 * 1024 * 1024, 40 * 1024 * 1024   # v7x: 64 MiB per TensorCore


def _pick_n_tile(n, bytes_per_sample, x_budget, requested=None, min_steps=4):
    """Sample-tile size: 8-aligned (or the whole tiny batch), close to the VMEM
    budget, but capped so the cdiv batch grid has >= min_steps steps (keeps both
    v7x TensorCores busy and gives the DMA pipeline work to overlap)."""
    if requested is not None:
        t = max(1, min(int(requested), n))
        if t != n:
            t = max(8, (t // 8) * 8) if n > 8 else n
        return t
    if n <= 8:
        return n
    budget_t = max(8, (x_budget // max(bytes_per_sample, 1)) // 8 * 8)
    step_cap = max(8, _round_up(-(-n // min_steps), 8))
    return int(min(budget_t, step_cap))


def _pick_c_tile(c, hw, itemsize, x_budget):
    """Channel tile for the 3D path.  Either the whole C, or a multiple of 128
    (the fc-weight block's lane constraint) sized so an 8-sample block fits."""
    pad_hw = _round_up(hw, 128)

    def blk_bytes(ct):
        return 8 * _round_up(ct, 8) * pad_hw * itemsize

    if c <= 128 or blk_bytes(c) <= x_budget:
        return c
    ct = (x_budget // (8 * pad_hw * itemsize)) // 128 * 128
    ct = max(128, int(ct))
    return c if ct >= c else ct


# --------------------------------------------------------------------------- #
# Fast path: small C and HW % 128 == 0.  x block is (T, C*HW): dense sublanes,
# dense lane axis, per-channel work is a lane-tile-aligned static slice.
# --------------------------------------------------------------------------- #
def _dame_flat_kernel(alpha, delta_scale, c, hw, inv_hw, inv_hwm1,
                      x_ref, w_ref, b_ref, desc_ref, p_ref):
    # x_ref: (T, C*HW)   w_ref: (1, C)   b_ref: (1, 1)
    # desc_ref: (T, C)   p_ref: (T, 1)
    t_rows = x_ref.shape[0]

    # ---- Pass 1: per-(sample, channel) unbiased variance -> fc, unrolled over C.
    # Slices are re-loaded from the VMEM ref so only one channel slice is live.
    feat = jnp.zeros((t_rows, 1), jnp.float32)
    for k in range(c):
        xs = x_ref[:, k * hw:(k + 1) * hw].astype(jnp.float32)      # (T, HW)
        mean = jnp.sum(xs, axis=-1, keepdims=True) * inv_hw
        d = xs - mean                                               # centered (torch-like)
        var_k = jnp.sum(d * d, axis=-1, keepdims=True) * inv_hwm1   # unbiased (ddof=1)
        feat = feat + var_k * w_ref[:, k:k + 1]                     # fc kept off the MXU
    feat = feat + b_ref[...]                                        # (T, 1)

    # ---- dynamic exponent (per sample).
    sig = 1.0 / (1.0 + jnp.exp(-alpha * feat))
    dyn_p = 1.0 + sig * delta_scale                                 # (T, 1)
    inv_p = 1.0 / dyn_p
    p_ref[...] = dyn_p.astype(p_ref.dtype)

    # ---- Pass 2 (hot): fused clamp + pow + pool; the full x^p tensor is never
    # materialized.  Exactly 2 EUP transcendentals per element.
    lane = jax.lax.broadcasted_iota(jnp.int32, (1, c), 1)
    pooled = jnp.zeros((t_rows, c), jnp.float32)
    for k in range(c):
        xs = x_ref[:, k * hw:(k + 1) * hw].astype(jnp.float32)
        xp_k = jnp.exp(dyn_p * jnp.log(jnp.maximum(xs, _EPS)))      # (T, HW)
        pooled_k = jnp.sum(xp_k, axis=-1, keepdims=True) * inv_hw   # (T, 1)
        pooled = jnp.where(lane == k, pooled_k, pooled)

    # ---- batched finalize: one EUP pass, one lane-dense store.
    desc_ref[...] = jnp.exp(jnp.log(pooled) * inv_p).astype(desc_ref.dtype)


def _dame_var_flat(x, fc_weight, fc_bias, alpha, delta_scale, n_tile=None):
    n, c, h, w = x.shape
    hw = h * w
    x2 = x.reshape(n, c * hw)                                       # contiguous, free reshape
    x_budget, vmem_limit = _budgets()
    t = _pick_n_tile(n, c * hw * x.dtype.itemsize, x_budget, n_tile)
    inv_hwm1 = (1.0 / (hw - 1)) if hw > 1 else float("nan")
    kernel = functools.partial(_dame_flat_kernel, float(alpha), float(delta_scale),
                               c, hw, 1.0 / hw, inv_hwm1)
    return pl.pallas_call(
        kernel,
        out_shape=(
            jax.ShapeDtypeStruct((n, c), jnp.float32),
            jax.ShapeDtypeStruct((n, 1), jnp.float32),
        ),
        grid=(pl.cdiv(n, t),),
        in_specs=[
            pl.BlockSpec((t, c * hw), lambda i: (i, 0)),
            pl.BlockSpec((1, c), lambda i: (0, 0)),
            pl.BlockSpec((1, 1), lambda i: (0, 0)),
        ],
        out_specs=(
            pl.BlockSpec((t, c), lambda i: (i, 0)),
            pl.BlockSpec((t, 1), lambda i: (i, 0)),
        ),
        compiler_params=pltpu.CompilerParams(
            dimension_semantics=("parallel",),
            vmem_limit_bytes=vmem_limit,
        ),
    )(x2, fc_weight, fc_bias)


# --------------------------------------------------------------------------- #
# Generic path: arbitrary C / HW.  Grid = (batch tiles, phase, channel tiles).
# Phase 0 accumulates feat (variance . fc) across channel tiles; phase 1 applies
# the dynamic pow + global average pool with dyn_p held in scratch.
# --------------------------------------------------------------------------- #
def _dame_3d_kernel(alpha, delta_scale, c_total, c_tile, inv_hw, inv_hwm1,
                    x_ref, w_ref, b_ref, desc_ref, p_ref,
                    feat_acc, dynp_sc, invp_sc):
    # x_ref: (T, Ct, HW)  w_ref: (1, Ct)  b_ref: (1, 1)
    # desc_ref: (T, Ct)   p_ref: (T, 1)   scratch: (T, 1) f32 each
    ph = pl.program_id(1)
    k = pl.program_id(2)
    nk = pl.num_programs(2)

    @pl.when(ph == 0)
    def _variance_phase():
        x = x_ref[...].astype(jnp.float32)                   # (T, Ct, HW)
        mean = jnp.sum(x, axis=-1, keepdims=True) * inv_hw
        d = x - mean
        var = jnp.sum(d * d, axis=-1) * inv_hwm1              # (T, Ct), unbiased

        term = var * w_ref[...]                                # (T, Ct)
        if c_total % c_tile != 0:                              # mask cdiv pad channels
            ch = jax.lax.broadcasted_iota(jnp.int32, (1, term.shape[-1]), 1) + k * c_tile
            term = jnp.where(ch < c_total, term, 0.0)
        contrib = jnp.sum(term, axis=-1, keepdims=True)        # (T, 1)

        @pl.when(k == 0)
        def _():
            feat_acc[...] = jnp.zeros_like(feat_acc)

        feat_acc[...] += contrib

        @pl.when(k == nk - 1)
        def _():
            feat = feat_acc[...] + b_ref[...]
            sig = 1.0 / (1.0 + jnp.exp(-alpha * feat))
            dyn_p = 1.0 + sig * delta_scale
            dynp_sc[...] = dyn_p
            invp_sc[...] = 1.0 / dyn_p
            p_ref[...] = dyn_p.astype(p_ref.dtype)

    @pl.when(ph == 1)
    def _pool_phase():
        x = x_ref[...].astype(jnp.float32)
        dyn_p = dynp_sc[...][:, :, None]                       # (T, 1, 1)
        xp = jnp.exp(dyn_p * jnp.log(jnp.maximum(x, _EPS)))    # (T, Ct, HW)
        pooled = jnp.sum(xp, axis=-1) * inv_hw                 # (T, Ct)
        desc_ref[...] = jnp.exp(jnp.log(pooled) * invp_sc[...]).astype(desc_ref.dtype)


def _dame_var_3d(x, fc_weight, fc_bias, alpha, delta_scale, n_tile=None, c_tile=None):
    n, c, h, w = x.shape
    hw = h * w
    x3 = x.reshape(n, c, hw)
    x_budget, vmem_limit = _budgets()

    if c_tile is None:
        c_t = _pick_c_tile(c, hw, x.dtype.itemsize, x_budget)
    else:
        c_t = int(c_tile)
        assert c_t == c or c_t % 128 == 0, (
            "channel tile must be a multiple of 128 (fc-weight lane constraint) or the full C")

    pad_hw = _round_up(hw, 128)
    pad_ct = _round_up(c_t, 8)
    bytes_per_sample = pad_ct * pad_hw * x.dtype.itemsize      # padded VMEM footprint / sample / step
    t = _pick_n_tile(n, bytes_per_sample, x_budget, n_tile)
    inv_hwm1 = (1.0 / (hw - 1)) if hw > 1 else float("nan")

    kernel = functools.partial(_dame_3d_kernel, float(alpha), float(delta_scale),
                               c, c_t, 1.0 / hw, inv_hwm1)
    return pl.pallas_call(
        kernel,
        out_shape=(
            jax.ShapeDtypeStruct((n, c), jnp.float32),
            jax.ShapeDtypeStruct((n, 1), jnp.float32),
        ),
        grid=(pl.cdiv(n, t), 2, pl.cdiv(c, c_t)),
        in_specs=[
            pl.BlockSpec((t, c_t, hw), lambda i, ph, k: (i, k, 0)),
            pl.BlockSpec((1, c_t), lambda i, ph, k: (0, k)),
            pl.BlockSpec((1, 1), lambda i, ph, k: (0, 0)),
        ],
        out_specs=(
            # ph*k keeps every desc block visited over consecutive grid steps only
            # (written once, in phase 1); p stays resident per batch tile.
            pl.BlockSpec((t, c_t), lambda i, ph, k: (i, ph * k)),
            pl.BlockSpec((t, 1), lambda i, ph, k: (i, 0)),
        ),
        scratch_shapes=[
            pltpu.VMEM((t, 1), jnp.float32),   # feat accumulator
            pltpu.VMEM((t, 1), jnp.float32),   # dyn_p
            pltpu.VMEM((t, 1), jnp.float32),   # 1 / dyn_p
        ],
        compiler_params=pltpu.CompilerParams(
            dimension_semantics=("parallel", "arbitrary", "arbitrary"),
            vmem_limit_bytes=vmem_limit,
        ),
    )(x3, fc_weight, fc_bias)


def dame_var(x, fc_weight, fc_bias, *, alpha, delta_scale, n_tile=None):
    """DAME_var forward.  x: (N, C, H, W) f32/bf16; fc_weight: (1, C); fc_bias: (1, 1).
    Returns (desc (N, C) f32, dyn_p (N, 1) f32).
    Note: H*W == 1 yields NaN (unbiased variance of one element), matching torch."""
    _, c, h, w = x.shape
    hw = h * w
    if c <= _MAX_UNROLLED_CH and hw % 128 == 0:
        return _dame_var_flat(x, fc_weight, fc_bias, alpha, delta_scale, n_tile)
    return _dame_var_3d(x, fc_weight, fc_bias, alpha, delta_scale, n_tile)


def dame_var_reference(x, fc_weight, fc_bias, *, alpha, delta_scale):
    """Pure-JAX mirror of the PyTorch forward, for validation."""
    n, c, h, w = x.shape
    xf = x.reshape(n, c, h * w).astype(jnp.float32)
    feat = jnp.var(xf, axis=-1, ddof=1)                      # unbiased, (N, C)
    feat = feat @ fc_weight.T + fc_bias                      # (N, 1)
    dyn_p = 1.0 + jax.nn.sigmoid(alpha * feat) * delta_scale
    xc = jnp.maximum(xf, _EPS)
    xp = xc ** dyn_p[:, :, None]
    pooled = jnp.mean(xp, axis=-1)                           # (N, C)
    desc = pooled ** (1.0 / dyn_p)
    return desc, dyn_p


if __name__ == "__main__":
    # Module hyper-parameters (per DAME_var.__init__).
    CH = 4
    DELTA_SCALE = 2.0
    INI_P = 3.0
    ALPHA = 1.0

    key = jax.random.PRNGKey(0)
    k1, k2, k3, k4 = jax.random.split(key, 4)

    # Module init: fc.weight <- zeros, fc.bias <- (ini_p - 1) / delta_scale.
    fc_w0 = jnp.zeros((1, CH), dtype=jnp.float32)
    fc_b0 = jnp.full((1, 1), (INI_P - 1.0) / DELTA_SCALE, dtype=jnp.float32)
    # Non-trivial params so the variance -> fc -> sigmoid path is exercised.
    fc_w1 = (0.05 * jnp.arange(CH, dtype=jnp.float32) - 0.07).reshape(1, CH)
    fc_b1 = jnp.full((1, 1), 0.3, dtype=jnp.float32)

    checks = []

    # (1) Flat path (HW % 128 == 0), auto tile -> multi-step batch grid.
    x = jax.random.normal(k1, (16, CH, 16, 16), dtype=jnp.float32)
    for wgt, bia in ((fc_w0, fc_b0), (fc_w1, fc_b1)):
        d, p = dame_var(x, wgt, bia, alpha=ALPHA, delta_scale=DELTA_SCALE)
        dr, pr = dame_var_reference(x, wgt, bia, alpha=ALPHA, delta_scale=DELTA_SCALE)
        checks.append((d, p, dr, pr))

    # (2) Flat path, ragged batch (cdiv padding on the last block).
    x13 = jax.random.normal(k2, (13, CH, 16, 16), dtype=jnp.float32)
    d, p = dame_var(x13, fc_w1, fc_b1, alpha=ALPHA, delta_scale=DELTA_SCALE, n_tile=8)
    dr, pr = dame_var_reference(x13, fc_w1, fc_b1, alpha=ALPHA, delta_scale=DELTA_SCALE)
    checks.append((d, p, dr, pr))

    # (3) Non-128-multiple spatial (7x7) -> 3D path, ragged batch.
    x7 = jax.random.normal(k3, (10, CH, 7, 7), dtype=jnp.float32)
    d, p = dame_var(x7, fc_w1, fc_b1, alpha=ALPHA, delta_scale=DELTA_SCALE)
    dr, pr = dame_var_reference(x7, fc_w1, fc_b1, alpha=ALPHA, delta_scale=DELTA_SCALE)
    checks.append((d, p, dr, pr))

    # (4) Large-C 3D fallback with channel tiling (c_tile=128, partial channel block).
    CBIG = 160
    xw = jax.random.normal(k4, (16, CBIG, 8, 8), dtype=jnp.float32)
    fw = (0.02 * jnp.sin(jnp.arange(CBIG, dtype=jnp.float32))).reshape(1, CBIG)
    fb = jnp.full((1, 1), 0.1, dtype=jnp.float32)
    d, p = _dame_var_3d(xw, fw, fb, ALPHA, DELTA_SCALE, n_tile=8, c_tile=128)
    dr, pr = dame_var_reference(xw, fw, fb, alpha=ALPHA, delta_scale=DELTA_SCALE)
    checks.append((d, p, dr, pr))

    jax.block_until_ready([c[0] for c in checks])

    for d, p, dr, pr in checks:
        assert jnp.allclose(p, pr, rtol=1e-5, atol=1e-6), "dyn_p mismatch"
        assert jnp.allclose(d, dr, rtol=1e-4, atol=1e-5), "desc mismatch"

    print("KERNEL_OK")
</pallas_src>

<mosaic_0001>
module attributes {stable_mosaic.version = 11 : i64} {
  func.func @_dame_flat_kernel(%arg0: i32, %arg1: memref<8x1024xf32, #tpu.memory_space<vmem>>, %arg2: memref<1x4xf32, #tpu.memory_space<vmem>>, %arg3: memref<1x1xf32, #tpu.memory_space<vmem>>, %arg4: memref<8x4xf32, #tpu.memory_space<vmem>>, %arg5: memref<8x1xf32, #tpu.memory_space<vmem>>) attributes {dimension_semantics = [#tpu.dimension_semantics<parallel>], iteration_bounds = array<i64: 2>, scalar_prefetch = 0 : i64, scratch_operands = 0 : i64, tpu.core_type = #tpu.core_type<tc>, window_params = [{transform_indices = @transform_0, window_bounds = array<i64: 8, 1024>}, {pipeline_mode = #tpu.pipeline_mode<synchronous>, transform_indices = @transform_1, window_bounds = array<i64: 1, 4>}, {pipeline_mode = #tpu.pipeline_mode<synchronous>, transform_indices = @transform_2, window_bounds = array<i64: 1, 1>}, {transform_indices = @transform_3, window_bounds = array<i64: 8, 4>}, {transform_indices = @transform_4, window_bounds = array<i64: 8, 1>}]} {
    %cst = arith.constant 0.000000e+00 : f32
    %0 = vector.broadcast %cst : f32 to vector<8x1xf32>
    %c0 = arith.constant 0 : index
    %c0_0 = arith.constant 0 : index
    %1 = vector.load %arg1[%c0, %c0_0] : memref<8x1024xf32, #tpu.memory_space<vmem>>, vector<8x256xf32>
    %cst_1 = arith.constant dense<0.000000e+00> : vector<8xf32>
    %2 = vector.multi_reduction <add>, %1, %cst_1 [1] : vector<8x256xf32> to vector<8xf32>
    %3 = vector.shape_cast %2 : vector<8xf32> to vector<8x1xf32>
    %cst_2 = arith.constant 3.906250e-03 : f32
    %4 = vector.broadcast %cst_2 : f32 to vector<8x1xf32>
    %5 = arith.mulf %3, %4 : vector<8x1xf32>
    %6 = vector.broadcast %5 : vector<8x1xf32> to vector<8x256xf32>
    %7 = arith.subf %1, %6 : vector<8x256xf32>
    %8 = arith.mulf %7, %7 : vector<8x256xf32>
    %cst_3 = arith.constant dense<0.000000e+00> : vector<8xf32>
    %9 = vector.multi_reduction <add>, %8, %cst_3 [1] : vector<8x256xf32> to vector<8xf32>
    %10 = vector.shape_cast %9 : vector<8xf32> to vector<8x1xf32>
    %cst_4 = arith.constant 0.00392156886 : f32
    %11 = vector.broadcast %cst_4 : f32 to vector<8x1xf32>
    %12 = arith.mulf %10, %11 : vector<8x1xf32>
    %c0_5 = arith.constant 0 : index
    %c0_6 = arith.constant 0 : index
    %13 = vector.load %arg2[%c0_5, %c0_6] : memref<1x4xf32, #tpu.memory_space<vmem>>, vector<1x1xf32>
    %14 = vector.broadcast %13 : vector<1x1xf32> to vector<8x1xf32>
    %15 = arith.mulf %12, %14 : vector<8x1xf32>
    %16 = arith.addf %0, %15 : vector<8x1xf32>
    %c0_7 = arith.constant 0 : index
    %c256 = arith.constant 256 : index
    %17 = vector.load %arg1[%c0_7, %c256] : memref<8x1024xf32, #tpu.memory_space<vmem>>, vector<8x256xf32>
    %cst_8 = arith.constant dense<0.000000e+00> : vector<8xf32>
    %18 = vector.multi_reduction <add>, %17, %cst_8 [1] : vector<8x256xf32> to vector<8xf32>
    %19 = vector.shape_cast %18 : vector<8xf32> to vector<8x1xf32>
    %cst_9 = arith.constant 3.906250e-03 : f32
    %20 = vector.broadcast %cst_9 : f32 to vector<8x1xf32>
    %21 = arith.mulf %19, %20 : vector<8x1xf32>
    %22 = vector.broadcast %21 : vector<8x1xf32> to vector<8x256xf32>
    %23 = arith.subf %17, %22 : vector<8x256xf32>
    %24 = arith.mulf %23, %23 : vector<8x256xf32>
    %cst_10 = arith.constant dense<0.000000e+00> : vector<8xf32>
    %25 = vector.multi_reduction <add>, %24, %cst_10 [1] : vector<8x256xf32> to vector<8xf32>
    %26 = vector.shape_cast %25 : vector<8xf32> to vector<8x1xf32>
    %cst_11 = arith.constant 0.00392156886 : f32
    %27 = vector.broadcast %cst_11 : f32 to vector<8x1xf32>
    %28 = arith.mulf %26, %27 : vector<8x1xf32>
    %c0_12 = arith.constant 0 : index
    %c1 = arith.constant 1 : index
    %29 = vector.load %arg2[%c0_12, %c1] : memref<1x4xf32, #tpu.memory_space<vmem>>, vector<1x1xf32>
    %30 = vector.broadcast %29 : vector<1x1xf32> to vector<8x1xf32>
    %31 = arith.mulf %28, %30 : vector<8x1xf32>
    %32 = arith.addf %16, %31 : vector<8x1xf32>
    %c0_13 = arith.constant 0 : index
    %c512 = arith.constant 512 : index
    %33 = vector.load %arg1[%c0_13, %c512] : memref<8x1024xf32, #tpu.memory_space<vmem>>, vector<8x256xf32>
    %cst_14 = arith.constant dense<0.000000e+00> : vector<8xf32>
    %34 = vector.multi_reduction <add>, %33, %cst_14 [1] : vector<8x256xf32> to vector<8xf32>
    %35 = vector.shape_cast %34 : vector<8xf32> to vector<8x1xf32>
    %cst_15 = arith.constant 3.906250e-03 : f32
    %36 = vector.broadcast %cst_15 : f32 to vector<8x1xf32>
    %37 = arith.mulf %35, %36 : vector<8x1xf32>
    %38 = vector.broadcast %37 : vector<8x1xf32> to vector<8x256xf32>
    %39 = arith.subf %33, %38 : vector<8x256xf32>
    %40 = arith.mulf %39, %39 : vector<8x256xf32>
    %cst_16 = arith.constant dense<0.000000e+00> : vector<8xf32>
    %41 = vector.multi_reduction <add>, %40, %cst_16 [1] : vector<8x256xf32> to vector<8xf32>
    %42 = vector.shape_cast %41 : vector<8xf32> to vector<8x1xf32>
    %cst_17 = arith.constant 0.00392156886 : f32
    %43 = vector.broadcast %cst_17 : f32 to vector<8x1xf32>
    %44 = arith.mulf %42, %43 : vector<8x1xf32>
    %c0_18 = arith.constant 0 : index
    %c2 = arith.constant 2 : index
    %45 = vector.load %arg2[%c0_18, %c2] : memref<1x4xf32, #tpu.memory_space<vmem>>, vector<1x1xf32>
    %46 = vector.broadcast %45 : vector<1x1xf32> to vector<8x1xf32>
    %47 = arith.mulf %44, %46 : vector<8x1xf32>
    %48 = arith.addf %32, %47 : vector<8x1xf32>
    %c0_19 = arith.constant 0 : index
    %c768 = arith.constant 768 : index
    %49 = vector.load %arg1[%c0_19, %c768] : memref<8x1024xf32, #tpu.memory_space<vmem>>, vector<8x256xf32>
    %cst_20 = arith.constant dense<0.000000e+00> : vector<8xf32>
    %50 = vector.multi_reduction <add>, %49, %cst_20 [1] : vector<8x256xf32> to vector<8xf32>
    %51 = vector.shape_cast %50 : vector<8xf32> to vector<8x1xf32>
    %cst_21 = arith.constant 3.906250e-03 : f32
    %52 = vector.broadcast %cst_21 : f32 to vector<8x1xf32>
    %53 = arith.mulf %51, %52 : vector<8x1xf32>
    %54 = vector.broadcast %53 : vector<8x1xf32> to vector<8x256xf32>
    %55 = arith.subf %49, %54 : vector<8x256xf32>
    %56 = arith.mulf %55, %55 : vector<8x256xf32>
    %cst_22 = arith.constant dense<0.000000e+00> : vector<8xf32>
    %57 = vector.multi_reduction <add>, %56, %cst_22 [1] : vector<8x256xf32> to vector<8xf32>
    %58 = vector.shape_cast %57 : vector<8xf32> to vector<8x1xf32>
    %cst_23 = arith.constant 0.00392156886 : f32
    %59 = vector.broadcast %cst_23 : f32 to vector<8x1xf32>
    %60 = arith.mulf %58, %59 : vector<8x1xf32>
    %c0_24 = arith.constant 0 : index
    %c3 = arith.constant 3 : index
    %61 = vector.load %arg2[%c0_24, %c3] : memref<1x4xf32, #tpu.memory_space<vmem>>, vector<1x1xf32>
    %62 = vector.broadcast %61 : vector<1x1xf32> to vector<8x1xf32>
    %63 = arith.mulf %60, %62 : vector<8x1xf32>
    %64 = arith.addf %48, %63 : vector<8x1xf32>
    %c0_25 = arith.constant 0 : index
    %c0_26 = arith.constant 0 : index
    %65 = vector.load %arg3[%c0_25, %c0_26] : memref<1x1xf32, #tpu.memory_space<vmem>>, vector<1x1xf32>
    %66 = vector.broadcast %65 : vector<1x1xf32> to vector<8x1xf32>
    %67 = arith.addf %64, %66 : vector<8x1xf32>
    %cst_27 = arith.constant -1.000000e+00 : f32
    %68 = vector.broadcast %cst_27 : f32 to vector<8x1xf32>
    %69 = arith.mulf %68, %67 : vector<8x1xf32>
    %70 = math.exp %69 : vector<8x1xf32>
    %cst_28 = arith.constant 1.000000e+00 : f32
    %71 = vector.broadcast %cst_28 : f32 to vector<8x1xf32>
    %72 = arith.addf %71, %70 : vector<8x1xf32>
    %cst_29 = arith.constant 1.000000e+00 : f32
    %73 = vector.broadcast %cst_29 : f32 to vector<8x1xf32>
    %74 = arith.divf %73, %72 : vector<8x1xf32>
    %cst_30 = arith.constant 2.000000e+00 : f32
    %75 = vector.broadcast %cst_30 : f32 to vector<8x1xf32>
    %76 = arith.mulf %74, %75 : vector<8x1xf32>
    %cst_31 = arith.constant 1.000000e+00 : f32
    %77 = vector.broadcast %cst_31 : f32 to vector<8x1xf32>
    %78 = arith.addf %77, %76 : vector<8x1xf32>
    %cst_32 = arith.constant 1.000000e+00 : f32
    %79 = vector.broadcast %cst_32 : f32 to vector<8x1xf32>
    %80 = arith.divf %79, %78 : vector<8x1xf32>
    %c0_33 = arith.constant 0 : index
    %c0_34 = arith.constant 0 : index
    %81 = vector.load %arg5[%c0_33, %c0_34] : memref<8x1xf32, #tpu.memory_space<vmem>>, vector<8x1xf32>
    tpu.vector_store %arg5[%c0_33, %c0_34], %78 {strides = array<i32>} : memref<8x1xf32, #tpu.memory_space<vmem>>, vector<8x1xf32>,
    %82 = tpu.iota {dimensions = array<i32: 1>} : vector<1x4xi32>
    %cst_35 = arith.constant 0.000000e+00 : f32
    %83 = vector.broadcast %cst_35 : f32 to vector<8x4xf32>
    %c0_36 = arith.constant 0 : index
    %c0_37 = arith.constant 0 : index
    %84 = vector.load %arg1[%c0_36, %c0_37] : memref<8x1024xf32, #tpu.memory_space<vmem>>, vector<8x256xf32>
    %cst_38 = arith.constant 9.99999997E-7 : f32
    %85 = vector.broadcast %cst_38 : f32 to vector<8x256xf32>
    %86 = arith.maximumf %84, %85 : vector<8x256xf32>
    %87 = math.log %86 : vector<8x256xf32>
    %88 = vector.broadcast %78 : vector<8x1xf32> to vector<8x256xf32>
    %89 = arith.mulf %88, %87 : vector<8x256xf32>
    %90 = math.exp %89 : vector<8x256xf32>
    %cst_39 = arith.constant dense<0.000000e+00> : vector<8xf32>
    %91 = vector.multi_reduction <add>, %90, %cst_39 [1] : vector<8x256xf32> to vector<8xf32>
    %92 = vector.shape_cast %91 : vector<8xf32> to vector<8x1xf32>
    %cst_40 = arith.constant 3.906250e-03 : f32
    %93 = vector.broadcast %cst_40 : f32 to vector<8x1xf32>
    %94 = arith.mulf %92, %93 : vector<8x1xf32>
    %c0_i32 = arith.constant 0 : i32
    %95 = vector.broadcast %c0_i32 : i32 to vector<1x4xi32>
    %96 = arith.cmpi eq, %82, %95 : vector<1x4xi32>
    %97 = vector.shape_cast %96 : vector<1x4xi1> to vector<1x4xi1>
    %98 = vector.broadcast %97 : vector<1x4xi1> to vector<8x4xi1>
    %99 = vector.shape_cast %94 : vector<8x1xf32> to vector<8x1xf32>
    %100 = vector.broadcast %99 : vector<8x1xf32> to vector<8x4xf32>
    %101 = arith.select %98, %100, %83 : vector<8x4xi1>, vector<8x4xf32>
    %c0_41 = arith.constant 0 : index
    %c256_42 = arith.constant 256 : index
    %102 = vector.load %arg1[%c0_41, %c256_42] : memref<8x1024xf32, #tpu.memory_space<vmem>>, vector<8x256xf32>
    %cst_43 = arith.constant 9.99999997E-7 : f32
    %103 = vector.broadcast %cst_43 : f32 to vector<8x256xf32>
    %104 = arith.maximumf %102, %103 : vector<8x256xf32>
    %105 = math.log %104 : vector<8x256xf32>
    %106 = vector.broadcast %78 : vector<8x1xf32> to vector<8x256xf32>
    %107 = arith.mulf %106, %105 : vector<8x256xf32>
    %108 = math.exp %107 : vector<8x256xf32>
    %cst_44 = arith.constant dense<0.000000e+00> : vector<8xf32>
    %109 = vector.multi_reduction <add>, %108, %cst_44 [1] : vector<8x256xf32> to vector<8xf32>
    %110 = vector.shape_cast %109 : vector<8xf32> to vector<8x1xf32>
    %cst_45 = arith.constant 3.906250e-03 : f32
    %111 = vector.broadcast %cst_45 : f32 to vector<8x1xf32>
    %112 = arith.mulf %110, %111 : vector<8x1xf32>
    %c1_i32 = arith.constant 1 : i32
    %113 = vector.broadcast %c1_i32 : i32 to vector<1x4xi32>
    %114 = arith.cmpi eq, %82, %113 : vector<1x4xi32>
    %115 = vector.shape_cast %114 : vector<1x4xi1> to vector<1x4xi1>
    %116 = vector.broadcast %115 : vector<1x4xi1> to vector<8x4xi1>
    %117 = vector.shape_cast %112 : vector<8x1xf32> to vector<8x1xf32>
    %118 = vector.broadcast %117 : vector<8x1xf32> to vector<8x4xf32>
    %119 = arith.select %116, %118, %101 : vector<8x4xi1>, vector<8x4xf32>
    %c0_46 = arith.constant 0 : index
    %c512_47 = arith.constant 512 : index
    %120 = vector.load %arg1[%c0_46, %c512_47] : memref<8x1024xf32, #tpu.memory_space<vmem>>, vector<8x256xf32>
    %cst_48 = arith.constant 9.99999997E-7 : f32
    %121 = vector.broadcast %cst_48 : f32 to vector<8x256xf32>
    %122 = arith.maximumf %120, %121 : vector<8x256xf32>
    %123 = math.log %122 : vector<8x256xf32>
    %124 = vector.broadcast %78 : vector<8x1xf32> to vector<8x256xf32>
    %125 = arith.mulf %124, %123 : vector<8x256xf32>
    %126 = math.exp %125 : vector<8x256xf32>
    %cst_49 = arith.constant dense<0.000000e+00> : vector<8xf32>
    %127 = vector.multi_reduction <add>, %126, %cst_49 [1] : vector<8x256xf32> to vector<8xf32>
    %128 = vector.shape_cast %127 : vector<8xf32> to vector<8x1xf32>
    %cst_50 = arith.constant 3.906250e-03 : f32
    %129 = vector.broadcast %cst_50 : f32 to vector<8x1xf32>
    %130 = arith.mulf %128, %129 : vector<8x1xf32>
    %c2_i32 = arith.constant 2 : i32
    %131 = vector.broadcast %c2_i32 : i32 to vector<1x4xi32>
    %132 = arith.cmpi eq, %82, %131 : vector<1x4xi32>
    %133 = vector.shape_cast %132 : vector<1x4xi1> to vector<1x4xi1>
    %134 = vector.broadcast %133 : vector<1x4xi1> to vector<8x4xi1>
    %135 = vector.shape_cast %130 : vector<8x1xf32> to vector<8x1xf32>
    %136 = vector.broadcast %135 : vector<8x1xf32> to vector<8x4xf32>
    %137 = arith.select %134, %136, %119 : vector<8x4xi1>, vector<8x4xf32>
    %c0_51 = arith.constant 0 : index
    %c768_52 = arith.constant 768 : index
    %138 = vector.load %arg1[%c0_51, %c768_52] : memref<8x1024xf32, #tpu.memory_space<vmem>>, vector<8x256xf32>
    %cst_53 = arith.constant 9.99999997E-7 : f32
    %139 = vector.broadcast %cst_53 : f32 to vector<8x256xf32>
    %140 = arith.maximumf %138, %139 : vector<8x256xf32>
    %141 = math.log %140 : vector<8x256xf32>
    %142 = vector.broadcast %78 : vector<8x1xf32> to vector<8x256xf32>
    %143 = arith.mulf %142, %141 : vector<8x256xf32>
    %144 = math.exp %143 : vector<8x256xf32>
    %cst_54 = arith.constant dense<0.000000e+00> : vector<8xf32>
    %145 = vector.multi_reduction <add>, %144, %cst_54 [1] : vector<8x256xf32> to vector<8xf32>
    %146 = vector.shape_cast %145 : vector<8xf32> to vector<8x1xf32>
    %cst_55 = arith.constant 3.906250e-03 : f32
    %147 = vector.broadcast %cst_55 : f32 to vector<8x1xf32>
    %148 = arith.mulf %146, %147 : vector<8x1xf32>
    %c3_i32 = arith.constant 3 : i32
    %149 = vector.broadcast %c3_i32 : i32 to vector<1x4xi32>
    %150 = arith.cmpi eq, %82, %149 : vector<1x4xi32>
    %151 = vector.shape_cast %150 : vector<1x4xi1> to vector<1x4xi1>
    %152 = vector.broadcast %151 : vector<1x4xi1> to vector<8x4xi1>
    %153 = vector.shape_cast %148 : vector<8x1xf32> to vector<8x1xf32>
    %154 = vector.broadcast %153 : vector<8x1xf32> to vector<8x4xf32>
    %155 = arith.select %152, %154, %137 : vector<8x4xi1>, vector<8x4xf32>
    %156 = math.log %155 : vector<8x4xf32>
    %157 = vector.broadcast %80 : vector<8x1xf32> to vector<8x4xf32>
    %158 = arith.mulf %156, %157 : vector<8x4xf32>
    %159 = math.exp %158 : vector<8x4xf32>
    %c0_56 = arith.constant 0 : index
    %c0_57 = arith.constant 0 : index
    %160 = vector.load %arg4[%c0_56, %c0_57] : memref<8x4xf32, #tpu.memory_space<vmem>>, vector<8x4xf32>
    tpu.vector_store %arg4[%c0_56, %c0_57], %159 {strides = array<i32>} : memref<8x4xf32, #tpu.memory_space<vmem>>, vector<8x4xf32>,
    return
  }
  func.func @transform_0(%arg0: i32) -> (i32, i32) {
    %c0_i32 = arith.constant 0 : i32
    %c0_i32_0 = arith.constant 0 : i32
    return %arg0, %c0_i32 : i32, i32
  }
  func.func @transform_1(%arg0: i32) -> (i32, i32) {
    %c0_i32 = arith.constant 0 : i32
    %c0_i32_0 = arith.constant 0 : i32
    %c0_i32_1 = arith.constant 0 : i32
    return %c0_i32, %c0_i32_0 : i32, i32
  }
  func.func @transform_2(%arg0: i32) -> (i32, i32) {
    %c0_i32 = arith.constant 0 : i32
    %c0_i32_0 = arith.constant 0 : i32
    %c0_i32_1 = arith.constant 0 : i32
    return %c0_i32, %c0_i32_0 : i32, i32
  }
  func.func @transform_3(%arg0: i32) -> (i32, i32) {
    %c0_i32 = arith.constant 0 : i32
    %c0_i32_0 = arith.constant 0 : i32
    return %arg0, %c0_i32 : i32, i32
  }
  func.func @transform_4(%arg0: i32) -> (i32, i32) {
    %c0_i32 = arith.constant 0 : i32
    %c0_i32_0 = arith.constant 0 : i32
    return %arg0, %c0_i32 : i32, i32
  }
}

</mosaic_0001>

<llo_original>
// kernel: tpu_custom_call.1
$region0: #{tpu_custom_call.1}
  #allocation0 [shape = 'u32[]', space=smem, size = 0x4, offset = 0x4, fixed_abs, tag = 'smem constant byte address 0x4 - core index']
  #allocation1 [shape = 'u32[144,128]{1,0:T(1,128)}', space=vmem, size = 0x12000, scoped, tag = 'internal scratch']
  #allocation2 [shape = 'f32[1,1]{1,0:T(1,128)S(1)}', space=vmem, size = 0x200, scoped, tag = 'scoped memory for tpu_custom_call.1']
  %s0 = inlined_call_operand.hbm [shape: f32[16,1024], index: 0, kind: input, shape index: {}]
  %s1 = inlined_call_operand.vmem [shape: f32[1,4], index: 1, kind: input, shape index: {}]
  %s2 = inlined_call_operand.<no memory space> [shape: f32[1,1], index: 2, kind: input, shape index: {}]
  %s3 = inlined_call_operand.vmem [shape: f32[16,4], index: 3, kind: output, shape index: {0}]
  %s4 = inlined_call_operand.vmem [shape: f32[16,1], index: 4, kind: output, shape index: {1}]
  %5 = xla_tuple %s3, %s4
  %s6 = sld [smem:[#allocation0]]
  $region57: #{tpu_custom_call.1} parent=0
    _
  %s8 = ssub.s32 1, %s6
  %s9 = scalar_select 0, %s8, %s6
  %v10 = vstv %s2
  %11 = vst [vmem:[#allocation2] sm:$0x1] %v10
  $region1: #{tpu_custom_call.1} parent=0
    #allocation3 [shape = 'u8[65536]{0}', space=vmem, size = 0x10000, scoped, tag = 'input window, operand 0']
    #allocation4 [shape = 's32[2]{0}', space=sflag, size = 0x8, scoped, tag = 'scoped memory for tpu_custom_call.1']
    %12 = vsyncpa [#allocation4], 0
    %s13 = scalar_lea.sflag [#allocation4], 1
    %14 = vsyncpa %s13, 0
    loop: start=0, step=1, limit=4
    $region2: #{tpu_custom_call.1} parent=1 // loop_pre_header
      _
    $region3: #{tpu_custom_call.1} parent=1 // loop_header
      %s16 = sphi 0, %s20
      %p17 = scmp.ge.s32.totalorder %s16, 4
      %s26 = sphi 0, %s28
      %s29 = sphi 0, %s26
      %s30 = sphi 0, %s29
      %s46 = sphi 0, %s30
      %s50 = sphi 0, %s50
      %s52 = sphi 0, %s50
      %s53 = sphi 0, %s52
      %s67 = sphi 0, %s53
      %s71 = sphi 0, %s71
      %s73 = sphi 0, %s71
      %s74 = sphi 0, %s73
      %s88 = sphi 0, %s74
      %s94 = sphi 0, %s96
      %s97 = sphi 0, %s94
      %s98 = sphi 0, %s97
      %s114 = sphi 0, %s98
      %s120 = sphi 0, %s122
      %s123 = sphi 0, %s120
      %s124 = sphi 0, %s123
      %s140 = sphi 0, %s124
    $region4: #{tpu_custom_call.1} parent=1 // loop_header_branch
      %19 = sbr.rel (%p17) target = $region8
    $region5: #{tpu_custom_call.1} parent=1 // loop_body
      %s21 = ssub.s32 %s16, 1
      %s22 = ssub.s32 %s16, 2
      %s23 = sadd.s32 %s16, 1
      %s24 = ssub.s32 %s16, %s23
      %p25 = scmp.eq.s32.totalorder %s24, 0
      %s27 = sadd.s32 %s26, 1
      %s28 = scalar_select %p25, %s26, %s27
      %p31 = pneg %p25
      %p32 = scmp.eq.s32.totalorder %s16, 1
      %p33 = por %p31, %p32
      %p34 = scmp.ne.s32.totalorder %s26, %s29
      %p35 = scmp.eq.s32.totalorder %s16, 0
      %p36 = por %p34, %p35
      %p37 = scmp.ne.s32.totalorder %s26, %s29
      %p38 = scmp.eq.s32.totalorder %s21, 1
      %p39 = por %p37, %p38
      %p40 = scmp.ne.s32.totalorder %s29, %s30
      %p41 = scmp.eq.s32.totalorder %s21, 0
      %p42 = por %p40, %p41
      %p43 = scmp.ne.s32.totalorder %s29, %s30
      %p44 = scmp.eq.s32.totalorder %s22, 1
      %p45 = por %p43, %p44
      %p47 = scmp.ne.s32.totalorder %s30, %s46
      %p48 = scmp.eq.s32.totalorder %s22, 0
      %p49 = por %p47, %p48
      %s51 = sadd.s32 %s50, 1
      %p54 = scmp.eq.s32.totalorder %s16, 1
      %p55 = scmp.ne.s32.totalorder %s50, %s52
      %p56 = scmp.eq.s32.totalorder %s16, 0
      %p57 = por %p55, %p56
      %p58 = scmp.ne.s32.totalorder %s50, %s52
      %p59 = scmp.eq.s32.totalorder %s21, 1
      %p60 = por %p58, %p59
      %p61 = scmp.ne.s32.totalorder %s52, %s53
      %p62 = scmp.eq.s32.totalorder %s21, 0
      %p63 = por %p61, %p62
      %p64 = scmp.ne.s32.totalorder %s52, %s53
      %p65 = scmp.eq.s32.totalorder %s22, 1
      %p66 = por %p64, %p65
      %p68 = scmp.ne.s32.totalorder %s53, %s67
      %p69 = scmp.eq.s32.totalorder %s22, 0
      %p70 = por %p68, %p69
      %s72 = sadd.s32 %s71, 1
      %p75 = scmp.eq.s32.totalorder %s16, 1
      %p76 = scmp.ne.s32.totalorder %s71, %s73
      %p77 = scmp.eq.s32.totalorder %s16, 0
      %p78 = por %p76, %p77
      %p79 = scmp.ne.s32.totalorder %s71, %s73
      %p80 = scmp.eq.s32.totalorder %s21, 1
      %p81 = por %p79, %p80
      %p82 = scmp.ne.s32.totalorder %s73, %s74
      %p83 = scmp.eq.s32.totalorder %s21, 0
      %p84 = por %p82, %p83
      %p85 = scmp.ne.s32.totalorder %s73, %s74
      %p86 = scmp.eq.s32.totalorder %s22, 1
      %p87 = por %p85, %p86
      %p89 = scmp.ne.s32.totalorder %s74, %s88
      %p90 = scmp.eq.s32.totalorder %s22, 0
      %p91 = por %p89, %p90
      %s92 = ssub.s32 %s16, %s23
      %p93 = scmp.eq.s32.totalorder %s92, 0
      %s95 = sadd.s32 %s94, 1
      %s96 = scalar_select %p93, %s94, %s95
      %p99 = pneg %p93
      %p100 = scmp.eq.s32.totalorder %s16, 1
      %p101 = por %p99, %p100
      %p102 = scmp.ne.s32.totalorder %s94, %s97
      %p103 = scmp.eq.s32.totalorder %s16, 0
      %p104 = por %p102, %p103
      %p105 = scmp.ne.s32.totalorder %s94, %s97
      %p106 = scmp.eq.s32.totalorder %s21, 1
      %p107 = por %p105, %p106
      %p108 = scmp.ne.s32.totalorder %s97, %s98
      %p109 = scmp.eq.s32.totalorder %s21, 0
      %p110 = por %p108, %p109
      %p111 = scmp.ne.s32.totalorder %s97, %s98
      %p112 = scmp.eq.s32.totalorder %s22, 1
      %p113 = por %p111, %p112
      %p115 = scmp.ne.s32.totalorder %s98, %s114
      %p116 = scmp.eq.s32.totalorder %s22, 0
      %p117 = por %p115, %p116
      %s118 = ssub.s32 %s16, %s23
      %p119 = scmp.eq.s32.totalorder %s118, 0
      %s121 = sadd.s32 %s120, 1
      %s122 = scalar_select %p119, %s120, %s121
      %p125 = pneg %p119
      %p126 = scmp.eq.s32.totalorder %s16, 1
      %p127 = por %p125, %p126
      %p128 = scmp.ne.s32.totalorder %s120, %s123
      %p129 = scmp.eq.s32.totalorder %s16, 0
      %p130 = por %p128, %p129
      %p131 = scmp.ne.s32.totalorder %s120, %s123
      %p132 = scmp.eq.s32.totalorder %s21, 1
      %p133 = por %p131, %p132
      %p134 = scmp.ne.s32.totalorder %s123, %s124
      %p135 = scmp.eq.s32.totalorder %s21, 0
      %p136 = por %p134, %p135
      %p137 = scmp.ne.s32.totalorder %s123, %s124
      %p138 = scmp.eq.s32.totalorder %s22, 1
      %p139 = por %p137, %p138
      %p141 = scmp.ne.s32.totalorder %s124, %s140
      %p142 = scmp.eq.s32.totalorder %s22, 0
      %p143 = por %p141, %p142
      %p144 = scmp.le.s32.totalorder 1, %s16
      %p145 = scmp.lt.s32.totalorder %s16, 3
      %p146 = pnand %p144, %p145
      %p147 = pneg %p146
      // Predicated region
      $region9: #{tpu_custom_call.1} parent=5 // pred_check
        _
      $region10: #{tpu_custom_call.1} parent=5 // pred_check_branch
        %149 = sbr.rel (%p146) target = $region12
      $region11: #{tpu_custom_call.1} parent=5 // pred_region
        %s150 = ssub.s32 %s16, 1
        // Predicated region
        $region13: #{tpu_custom_call.1} parent=11 // pred_check
          %p151 = pneg %p63
        $region14: #{tpu_custom_call.1} parent=11 // pred_check_branch
          %153 = sbr.rel (%p151) target = $region16
        $region15: #{tpu_custom_call.1} parent=11 // pred_region
          _
        $region16: #{tpu_custom_call.1} parent=11 // pred_fallthru
          _
        // Predicated region
        $region17: #{tpu_custom_call.1} parent=11 // pred_check
          %p154 = pneg %p84
        $region18: #{tpu_custom_call.1} parent=11 // pred_check_branch
          %156 = sbr.rel (%p154) target = $region20
        $region19: #{tpu_custom_call.1} parent=11 // pred_region
          _
        $region20: #{tpu_custom_call.1} parent=11 // pred_fallthru
          _
      $region12: #{tpu_custom_call.1} parent=5 // pred_fallthru
        _
      %p157 = scmp.lt.s32.totalorder %s16, 2
      // Predicated region
      $region21: #{tpu_custom_call.1} parent=5 // pred_check
        %p158 = pneg %p157
      $region22: #{tpu_custom_call.1} parent=5 // pred_check_branch
        %160 = sbr.rel (%p158) target = $region24
      $region23: #{tpu_custom_call.1} parent=5 // pred_region
        // Predicated region
        $region25: #{tpu_custom_call.1} parent=23 // pred_check
          %p161 = pneg %p36
        $region26: #{tpu_custom_call.1} parent=23 // pred_check_branch
          %163 = sbr.rel (%p161) target = $region28
        $region27: #{tpu_custom_call.1} parent=23 // pred_region
          %s164 = sand.u32 %s26, 1
          %s165 = scalar_lea.sflag [#allocation4], %s164
          %s166 = sand.u32 %s26, 1
          %s167 = smul.addr %s166, 64
          %s168 = scalar_lea.vmem [#allocation3], %s167
          %s170 = ssub.s32 1024, 1024
          %171 = vsyncadd %s165, %s170
          %s172 = smul.addr %s16, 8
          %s173 = smul.addr %s172, 128
          %s174 = scalar_lea.hbm %s0, %s173
          %s176 = sshll.u32 %s168, 4
          %s177 = int_to_ptr.vmem [resolvable:$true] %s176
          %179 = dma.hbm_to_vmem [thread:$0]  %s174, 1024, %s177, %s165
        $region28: #{tpu_custom_call.1} parent=23 // pred_fallthru
          _
      $region24: #{tpu_custom_call.1} parent=5 // pred_fallthru
        _
      %p180 = scmp.le.s32.totalorder 1, %s16
      %p181 = scmp.lt.s32.totalorder %s16, 3
      %p182 = pnand %p180, %p181
      %p183 = pneg %p182
      // Predicated region
      $region29: #{tpu_custom_call.1} parent=5 // pred_check
        _
      $region30: #{tpu_custom_call.1} parent=5 // pred_check_branch
        %185 = sbr.rel (%p182) target = $region32
      $region31: #{tpu_custom_call.1} parent=5 // pred_region
        %s186 = ssub.s32 %s16, 1
        %s187 = sand.u32 %s29, 1
        %s188 = scalar_lea.sflag [#allocation4], %s187
        %s189 = sand.u32 %s29, 1
        %s190 = smul.addr %s189, 64
        %s191 = scalar_lea.vmem [#allocation3], %s190
        // Predicated region
        $region33: #{tpu_custom_call.1} parent=31 // pred_check
          %p192 = pneg %p42
        $region34: #{tpu_custom_call.1} parent=31 // pred_check_branch
          %194 = sbr.rel (%p192) target = $region36
        $region35: #{tpu_custom_call.1} parent=31 // pred_region
          %195 = dma.done %s188, 1024
        $region36: #{tpu_custom_call.1} parent=31 // pred_fallthru
          _
        %s196 = sand.u32 %s29, 1
        %s197 = scalar_lea.sflag [#allocation4], %s196
        %s198 = sand.u32 %s29, 1
        %s199 = smul.addr %s198, 64
        %s200 = scalar_lea.vmem [#allocation3], %s199
        %p201 = pneg %p42
        %p202 = pneg %p39
        %p203 = pneg %p63
        %p204 = pneg %p60
        %p205 = pneg %p84
        %p206 = pneg %p81
        %p207 = pneg %p110
        %p208 = pneg %p107
        %p209 = scmp.lt.s32.totalorder %s21, 1
        %s210 = scalar_select %p209, %s21, 1
        %s211 = smul.addr %s210, 8
        %s212 = scalar_lea.vmem %s3, %s211
        %p213 = pneg %p136
        %p214 = pneg %p133
        %p215 = scmp.lt.s32.totalorder %s21, 1
        %s216 = scalar_select %p215, %s21, 1
        %s217 = smul.addr %s216, 8
        %s218 = scalar_lea.vmem %s4, %s217
        %p219 = scmp.lt.s32.totalorder %s21, 1
        %s220 = scalar_select %p219, %s21, 1
        %s221 = smul.addr %s220, 8
        %s222 = scalar_lea.vmem %s3, %s221
        %p223 = scmp.lt.s32.totalorder %s21, 1
        %s224 = scalar_select %p223, %s21, 1
        %s225 = smul.addr %s224, 8
        %s226 = scalar_lea.vmem %s4, %s225
        %v227 = vld [vmem:[%s191] sm:$0xff]
        %v228 = vld [vmem:[%s191 + $0x8] sm:$0xff]
        %v229 = vadd.f32 %v227, %v228
        %230 = vadd.xlane.f32.xlu0 %v229
        %v231 = vpop.xlane.xlu0 %230
        %v232 = vmul.f32 %v231, 0.00390625
        %v233 = vsub.f32 %v227, %v232
        %v234 = vsub.f32 %v228, %v232
        %v235 = vmul.f32 %v233, %v233
        %v236 = vmul.f32 %v234, %v234
        %v237 = vadd.f32 %v235, %v236
        %238 = vadd.xlane.f32.xlu0 %v237
        %v239 = vpop.xlane.xlu0 %238
        %v240 = vmul.f32 %v239, 0.003921569
        %v241 = vld [vmem:[%s1] sm:$0x1]
        %v243 = vlaneseq
        %v244 = vshrl.u32 %v243, 7
        %v245 = vsub.s32 0, %v244
        %v246 = vrot.slane %v241, %v245
        %v248 = vmul.f32 %v240, %v246
        %v249 = vadd.f32 %v248, 0.0
        %v250 = vld [vmem:[%s191 + $0x10] sm:$0xff]
        %v251 = vld [vmem:[%s191 + $0x18] sm:$0xff]
        %v252 = vadd.f32 %v250, %v251
        %253 = vadd.xlane.f32.xlu0 %v252
        %v254 = vpop.xlane.xlu0 %253
        %v255 = vmul.f32 %v254, 0.00390625
        %v256 = vsub.f32 %v250, %v255
        %v257 = vsub.f32 %v251, %v255
        %v258 = vmul.f32 %v256, %v256
        %v259 = vmul.f32 %v257, %v257
        %v260 = vadd.f32 %v258, %v259
        %261 = vadd.xlane.f32.xlu0 %v260
        %v262 = vpop.xlane.xlu0 %261
        %v263 = vmul.f32 %v262, 0.003921569
        %v264 = vmul.f32 %v263, %v246
        %266 = vrot.lane.b32.xlu0 %v264, 127
        %v267 = vpop.permute.xlu0 %266
        %v269 = vadd.f32 %v249, %v267
        %v270 = vld [vmem:[%s191 + $0x20] sm:$0xff]
        %v271 = vld [vmem:[%s191 + $0x28] sm:$0xff]
        %v272 = vadd.f32 %v270, %v271
        %273 = vadd.xlane.f32.xlu0 %v272
        %v274 = vpop.xlane.xlu0 %273
        %v275 = vmul.f32 %v274, 0.00390625
        %v276 = vsub.f32 %v270, %v275
        %v277 = vsub.f32 %v271, %v275
        %v278 = vmul.f32 %v276, %v276
        %v279 = vmul.f32 %v277, %v277
        %v280 = vadd.f32 %v278, %v279
        %281 = vadd.xlane.f32.xlu0 %v280
        %v282 = vpop.xlane.xlu0 %281
        %v283 = vmul.f32 %v282, 0.003921569
        %v284 = vmul.f32 %v283, %v246
        %286 = vrot.lane.b32.xlu0 %v284, 126
        %v287 = vpop.permute.xlu0 %286
        %v289 = vadd.f32 %v269, %v287
        %v290 = vld [vmem:[%s191 + $0x30] sm:$0xff]
        %v291 = vld [vmem:[%s191 + $0x38] sm:$0xff]
        %v292 = vadd.f32 %v290, %v291
        %293 = vadd.xlane.f32.xlu0 %v292
        %v294 = vpop.xlane.xlu0 %293
        %v295 = vmul.f32 %v294, 0.00390625
        %v296 = vsub.f32 %v290, %v295
        %v297 = vsub.f32 %v291, %v295
        %v298 = vmul.f32 %v296, %v296
        %v299 = vmul.f32 %v297, %v297
        %v300 = vadd.f32 %v298, %v299
        %301 = vadd.xlane.f32.xlu0 %v300
        %v302 = vpop.xlane.xlu0 %301
        %v303 = vmul.f32 %v302, 0.003921569
        %v304 = vmul.f32 %v303, %v246
        %306 = vrot.lane.b32.xlu0 %v304, 125
        %v307 = vpop.permute.xlu0 %306
        %v309 = vadd.f32 %v289, %v307
        %v310 = vld [vmem:[#allocation2] sm:$0x1]
        %v312 = vlaneseq
        %v313 = vshrl.u32 %v312, 7
        %v314 = vsub.s32 0, %v313
        %v315 = vrot.slane %v310, %v314
        %v317 = vadd.f32 %v309, %v315
        %v318 = vmul.f32 %v317, -1.0
        %v319 = vmul.f32 %v318, 1.442695
        %v320 = vpow.pop %v319
        %v321 = vadd.f32 %v320, 1.0
        %v322 = vrcp.pop %v321
        %v323 = vmul.f32 1.0, %v322
        %v324 = vmul.f32 %v323, 2.0
        %v325 = vadd.f32 %v324, 1.0
        %v326 = vrcp.pop %v325
        %v327 = vmul.f32 1.0, %v326
        %vm328 = vcmask 7168
        %329 = vst.msk [vmem:[%s226] sm:$0xff] %vm328, %v325
        %v330 = vlaneseq
        %v331 = vand.u32 %v330, 127
        %v332 = vld [vmem:[%s191] sm:$0xff]
        %v333 = vld [vmem:[%s191 + $0x8] sm:$0xff]
        %v334 = vmax.f32 %v332, 1e-06
        %v335 = vmax.f32 %v333, 1e-06
        %v336 = vlog2.pop %v334
        %v337 = vmul.f32 %v336, 0.6931472
        %v338 = vlog2.pop %v335
        %v339 = vmul.f32 %v338, 0.6931472
        %341 = vset.pattern.permute.xlu0 0
        %342 = vperm.xlu0 %341, %v325
        %v343 = vpop.permute.xlu0 %342
        %v345 = vmul.f32 %v343, %v337
        %v346 = vmul.f32 %v343, %v339
        %v347 = vmul.f32 %v345, 1.442695
        %v348 = vpow.pop %v347
        %v349 = vmul.f32 %v346, 1.442695
        %v350 = vpow.pop %v349
        %v351 = vadd.f32 %v348, %v350
        %352 = vadd.xlane.f32.xlu0 %v351
        %v353 = vpop.xlane.xlu0 %352
        %v354 = vmul.f32 %v353, 0.00390625
        %vm355 = vcmp.eq.s32.totalorder %v331, 0
        %v356 = vsel %vm355, 1, 0
        %vm357 = vcmp.eq.s32.totalorder %v356, 1
        %v358 = vsel %vm357, %v354, 0.0
        %v359 = vld [vmem:[%s191 + $0x10] sm:$0xff]
        %v360 = vld [vmem:[%s191 + $0x18] sm:$0xff]
        %v361 = vmax.f32 %v359, 1e-06
        %v362 = vmax.f32 %v360, 1e-06
        %v363 = vlog2.pop %v361
        %v364 = vmul.f32 %v363, 0.6931472
        %v365 = vlog2.pop %v362
        %v366 = vmul.f32 %v365, 0.6931472
        %v367 = vmul.f32 %v343, %v364
        %v368 = vmul.f32 %v343, %v366
        %v369 = vmul.f32 %v367, 1.442695
        %v370 = vpow.pop %v369
        %v371 = vmul.f32 %v368, 1.442695
        %v372 = vpow.pop %v371
        %v373 = vadd.f32 %v370, %v372
        %374 = vadd.xlane.f32.xlu0 %v373
        %v375 = vpop.xlane.xlu0 %374
        %v376 = vmul.f32 %v375, 0.00390625
        %vm377 = vcmp.eq.s32.totalorder %v331, 1
        %v378 = vsel %vm377, 1, 0
        %vm379 = vcmp.eq.s32.totalorder %v378, 1
        %v380 = vsel %vm379, %v376, %v358
        %v381 = vld [vmem:[%s191 + $0x20] sm:$0xff]
        %v382 = vld [vmem:[%s191 + $0x28] sm:$0xff]
        %v383 = vmax.f32 %v381, 1e-06
        %v384 = vmax.f32 %v382, 1e-06
        %v385 = vlog2.pop %v383
        %v386 = vmul.f32 %v385, 0.6931472
        %v387 = vlog2.pop %v384
        %v388 = vmul.f32 %v387, 0.6931472
        %v389 = vmul.f32 %v343, %v386
        %v390 = vmul.f32 %v343, %v388
        %v391 = vmul.f32 %v389, 1.442695
        %v392 = vpow.pop %v391
        %v393 = vmul.f32 %v390, 1.442695
        %v394 = vpow.pop %v393
        %v395 = vadd.f32 %v392, %v394
        %396 = vadd.xlane.f32.xlu0 %v395
        %v397 = vpop.xlane.xlu0 %396
        %v398 = vmul.f32 %v397, 0.00390625
        %vm399 = vcmp.eq.s32.totalorder %v331, 2
        %v400 = vsel %vm399, 1, 0
        %vm401 = vcmp.eq.s32.totalorder %v400, 1
        %v402 = vsel %vm401, %v398, %v380
        %v403 = vld [vmem:[%s191 + $0x30] sm:$0xff]
        %v404 = vld [vmem:[%s191 + $0x38] sm:$0xff]
        %v405 = vmax.f32 %v403, 1e-06
        %v406 = vmax.f32 %v404, 1e-06
        %v407 = vlog2.pop %v405
        %v408 = vmul.f32 %v407, 0.6931472
        %v409 = vlog2.pop %v406
        %v410 = vmul.f32 %v409, 0.6931472
        %v411 = vmul.f32 %v343, %v408
        %v412 = vmul.f32 %v343, %v410
        %v413 = vmul.f32 %v411, 1.442695
        %v414 = vpow.pop %v413
        %v415 = vmul.f32 %v412, 1.442695
        %v416 = vpow.pop %v415
        %v417 = vadd.f32 %v414, %v416
        %418 = vadd.xlane.f32.xlu0 %v417
        %v419 = vpop.xlane.xlu0 %418
        %v420 = vmul.f32 %v419, 0.00390625
        %vm421 = vcmp.eq.s32.totalorder %v331, 3
        %v422 = vsel %vm421, 1, 0
        %vm423 = vcmp.eq.s32.totalorder %v422, 1
        %v424 = vsel %vm423, %v420, %v402
        %v425 = vlog2.pop %v424
        %v426 = vmul.f32 %v425, 0.6931472
        %428 = vset.pattern.permute.xlu0 0
        %429 = vperm.xlu0 %428, %v327
        %v430 = vpop.permute.xlu0 %429
        %v432 = vmul.f32 %v426, %v430
        %v433 = vmul.f32 %v432, 1.442695
        %v434 = vpow.pop %v433
        %vm435 = vcmask 31744
        %436 = vst.msk [vmem:[%s222] sm:$0xff] %vm435, %v434
        %p437 = scmp.lt.s32.totalorder %s21, 1
        %s438 = scalar_select %p437, %s21, 1
        %s439 = smul.addr %s438, 8
        %s440 = scalar_lea.vmem %s3, %s439
        %p441 = scmp.lt.s32.totalorder %s21, 1
        %s442 = scalar_select %p441, %s21, 1
        %s443 = smul.addr %s442, 8
        %s444 = scalar_lea.vmem %s4, %s443
        // Predicated region
        $region37: #{tpu_custom_call.1} parent=31 // pred_check
          %p445 = pneg %p107
        $region38: #{tpu_custom_call.1} parent=31 // pred_check_branch
          %447 = sbr.rel (%p445) target = $region40
        $region39: #{tpu_custom_call.1} parent=31 // pred_region
          _
        $region40: #{tpu_custom_call.1} parent=31 // pred_fallthru
          _
        // Predicated region
        $region41: #{tpu_custom_call.1} parent=31 // pred_check
          %p448 = pneg %p133
        $region42: #{tpu_custom_call.1} parent=31 // pred_check_branch
          %450 = sbr.rel (%p448) target = $region44
        $region43: #{tpu_custom_call.1} parent=31 // pred_region
          _
        $region44: #{tpu_custom_call.1} parent=31 // pred_fallthru
          _
      $region32: #{tpu_custom_call.1} parent=5 // pred_fallthru
        _
      %p451 = scmp.le.s32.totalorder 2, %s16
      // Predicated region
      $region45: #{tpu_custom_call.1} parent=5 // pred_check
        %p452 = pneg %p451
      $region46: #{tpu_custom_call.1} parent=5 // pred_check_branch
        %454 = sbr.rel (%p452) target = $region48
      $region47: #{tpu_custom_call.1} parent=5 // pred_region
        %s455 = ssub.s32 %s16, 2
        // Predicated region
        $region49: #{tpu_custom_call.1} parent=47 // pred_check
          %p456 = pneg %p113
        $region50: #{tpu_custom_call.1} parent=47 // pred_check_branch
          %458 = sbr.rel (%p456) target = $region52
        $region51: #{tpu_custom_call.1} parent=47 // pred_region
          %p459 = scmp.lt.s32.totalorder %s22, 1
          %s460 = scalar_select %p459, %s22, 1
          %s461 = smul.addr %s460, 8
          %s462 = scalar_lea.vmem %s3, %s461
        $region52: #{tpu_custom_call.1} parent=47 // pred_fallthru
          _
        // Predicated region
        $region53: #{tpu_custom_call.1} parent=47 // pred_check
          %p463 = pneg %p139
        $region54: #{tpu_custom_call.1} parent=47 // pred_check_branch
          %465 = sbr.rel (%p463) target = $region56
        $region55: #{tpu_custom_call.1} parent=47 // pred_region
          %p466 = scmp.lt.s32.totalorder %s22, 1
          %s467 = scalar_select %p466, %s22, 1
          %s468 = smul.addr %s467, 8
          %s469 = scalar_lea.vmem %s4, %s468
        $region56: #{tpu_custom_call.1} parent=47 // pred_fallthru
          _
      $region48: #{tpu_custom_call.1} parent=5 // pred_fallthru
        _
    $region6: #{tpu_custom_call.1} parent=1 // loop_footer
      %s20 = sadd.s32 1, %s16
    $region7: #{tpu_custom_call.1} parent=1 // loop_footer_branch
      %15 = sbr.rel target = $region3
    $region8: #{tpu_custom_call.1} parent=1 // loop_exit
      _
    %470 = vsyncpa [#allocation4], 1
    %s471 = scalar_lea.sflag [#allocation4], 1
    %472 = vsyncpa %s471, 1

</llo_original>
